<compile_context>
chip_gen: v5e
topology: v5e:2x2
jax: 0.10.0
libtpu: 0.0.40
codegen_flags: <defaults>
</compile_context>

<pallas_src>
import jax
import jax.numpy as jnp
from jax.experimental import pallas as pl
from jax.experimental.pallas import tpu as pltpu


def _layernorm(x, gamma, beta, eps=1e-5):
    mu = jnp.mean(x, axis=-1, keepdims=True)
    var = jnp.mean((x - mu) ** 2, axis=-1, keepdims=True)
    return (x - mu) * jax.lax.rsqrt(var + eps) * gamma + beta


def encoder_layer_kernel(
    x_ref,
    wqkv_ref, bqkv_ref,
    wo_ref, bo_ref,
    g1_ref, be1_ref,
    w1_ref, b1_ref,
    w2_ref, b2_ref,
    g2_ref, be2_ref,
    out_ref, attn_ref,
):
    B, S, D = x_ref.shape
    x = x_ref[...]                          # (B, S, D) f32
    x2d = x.reshape(B * S, D)               # position-wise rows (free leading-dim merge)

    # --- fused QKV projection (bf16 operands on MXU, f32 accumulation) ---
    qkv = jnp.dot(x2d.astype(jnp.bfloat16), wqkv_ref[...],
                  preferred_element_type=jnp.float32) + bqkv_ref[...]   # (B*S, 3D)
    q = qkv[:, :D].reshape(B, S, D)
    k = qkv[:, D:2 * D].reshape(B, S, D)
    v = qkv[:, 2 * D:].reshape(B, S, D)

    # --- single-head FullAttention; contract last dims directly (no k.T) ---
    # TODO(synk): attn_mask is ignored (module is exercised with attn_mask=None).
    scale = 1.0 / jnp.sqrt(jnp.float32(D))
    scores = jax.lax.dot_general(
        q.astype(jnp.bfloat16), k.astype(jnp.bfloat16),
        dimension_numbers=(((2,), (2,)), ((0,), (0,))),
        preferred_element_type=jnp.float32) * scale                      # (B, S, S)

    m = jnp.max(scores, axis=-1, keepdims=True)
    p = jnp.exp(scores - m)
    a = p * pl.reciprocal(jnp.sum(p, axis=-1, keepdims=True), approx=True)

    ctx = jax.lax.dot_general(
        a.astype(jnp.bfloat16), v.astype(jnp.bfloat16),
        dimension_numbers=(((2,), (1,)), ((0,), (0,))),
        preferred_element_type=jnp.float32)                              # (B, S, D)

    new_x = jnp.dot(ctx.reshape(B * S, D).astype(jnp.bfloat16), wo_ref[...],
                    preferred_element_type=jnp.float32) + bo_ref[...]

    # --- residual + norm1 (f32) ---
    x1 = _layernorm(x2d + new_x, g1_ref[...], be1_ref[...])

    # --- position-wise FFN (conv1d with kernel_size=1 == linear) ---
    y = jnp.dot(x1.astype(jnp.bfloat16), w1_ref[...],
                preferred_element_type=jnp.float32) + b1_ref[...]
    y = jnp.maximum(y, 0.0)
    y = jnp.dot(y.astype(jnp.bfloat16), w2_ref[...],
                preferred_element_type=jnp.float32) + b2_ref[...]

    # --- residual + norm2 ---
    out_ref[...] = _layernorm(x1 + y, g2_ref[...], be2_ref[...]).reshape(B, S, D)
    attn_ref[...] = a   # the module's contract returns the attention maps


def encoder_layer_forward(x, params):
    """One encoder layer over x: [B, S, D] -> (out [B, S, D], attn [B, S, S])."""
    B, S, D = x.shape
    Dff = params["w1"].shape[1]

    # Fuse QKV weights; cast matmul weights to bf16 once (halves weight bytes).
    wqkv = jnp.concatenate(
        [params["wq"], params["wk"], params["wv"]], axis=1).astype(jnp.bfloat16)
    bqkv = jnp.concatenate([params["bq"], params["bk"], params["bv"]], axis=1)
    wo = params["wo"].astype(jnp.bfloat16)
    w1 = params["w1"].astype(jnp.bfloat16)
    w2 = params["w2"].astype(jnp.bfloat16)

    def full(shape):
        return pl.BlockSpec(shape, lambda i: (0,) * len(shape))

    in_specs = [
        full((B, S, D)),                          # x
        full((D, 3 * D)), full((1, 3 * D)),       # fused wqkv, bqkv
        full((D, D)), full((1, D)),               # wo, bo
        full((1, D)), full((1, D)),               # norm1 gamma, beta
        full((D, Dff)), full((1, Dff)),           # ffn w1, b1
        full((Dff, D)), full((1, D)),             # ffn w2, b2
        full((1, D)), full((1, D)),               # norm2 gamma, beta
    ]
    out_specs = [
        full((B, S, D)),
        full((B, S, S)),
    ]
    out_shape = [
        jax.ShapeDtypeStruct((B, S, D), jnp.float32),
        jax.ShapeDtypeStruct((B, S, S), jnp.float32),
    ]

    call = pl.pallas_call(
        encoder_layer_kernel,
        grid=(1,),
        in_specs=in_specs,
        out_specs=out_specs,
        out_shape=out_shape,
        compiler_params=pltpu.CompilerParams(
            dimension_semantics=("arbitrary",),
            vmem_limit_bytes=32 * 1024 * 1024,
        ),
    )
    return call(
        x,
        wqkv, bqkv,
        wo, params["bo"],
        params["g1"], params["be1"],
        w1, params["b1"], w2, params["b2"],
        params["g2"], params["be2"],
    )


def init_encoder_params(key, d_model, d_ff):
    ks = jax.random.split(key, 8)
    s = 0.05
    return {
        "wq": s * jax.random.normal(ks[0], (d_model, d_model), jnp.float32),
        "bq": jnp.zeros((1, d_model), jnp.float32),
        "wk": s * jax.random.normal(ks[1], (d_model, d_model), jnp.float32),
        "bk": jnp.zeros((1, d_model), jnp.float32),
        "wv": s * jax.random.normal(ks[2], (d_model, d_model), jnp.float32),
        "bv": jnp.zeros((1, d_model), jnp.float32),
        "wo": s * jax.random.normal(ks[3], (d_model, d_model), jnp.float32),
        "bo": jnp.zeros((1, d_model), jnp.float32),
        "g1": jnp.ones((1, d_model), jnp.float32),
        "be1": jnp.zeros((1, d_model), jnp.float32),
        "w1": s * jax.random.normal(ks[4], (d_model, d_ff), jnp.float32),
        "b1": jnp.zeros((1, d_ff), jnp.float32),
        "w2": s * jax.random.normal(ks[5], (d_ff, d_model), jnp.float32),
        "b2": jnp.zeros((1, d_model), jnp.float32),
        "g2": jnp.ones((1, d_model), jnp.float32),
        "be2": jnp.zeros((1, d_model), jnp.float32),
    }


def encoder_stack_forward(x, params_list, inp_lens, attn_mask=None):
    """EncoderStack.forward: encoder i sees the last L // 2**inp_lens[i] tokens;
    outputs are concatenated along the sequence axis."""
    # TODO(synk): attn_mask is unused (module is exercised with attn_mask=None).
    L = x.shape[1]
    x_stack, attns = [], []
    for i_len, params in zip(inp_lens, params_list):
        inp_len = L // (2 ** i_len)
        x_s, attn = encoder_layer_forward(x[:, -inp_len:, :], params)
        x_stack.append(x_s)
        attns.append(attn)
    return jnp.concatenate(x_stack, axis=-2), attns


# ----------------- pure-JAX f32 reference (for sanity check) -----------------
def _encoder_layer_reference(x, params):
    q = x @ params["wq"] + params["bq"]
    k = x @ params["wk"] + params["bk"]
    v = x @ params["wv"] + params["bv"]
    scale = 1.0 / jnp.sqrt(jnp.float32(x.shape[-1]))
    scores = jnp.einsum("bqd,bkd->bqk", q, k) * scale
    a = jax.nn.softmax(scores, axis=-1)
    ctx = jnp.einsum("bqk,bkd->bqd", a, v)
    new_x = ctx @ params["wo"] + params["bo"]
    x1 = _layernorm(x + new_x, params["g1"], params["be1"])
    y = jnp.maximum(x1 @ params["w1"] + params["b1"], 0.0)
    y = y @ params["w2"] + params["b2"]
    return _layernorm(x1 + y, params["g2"], params["be2"]), a


def encoder_stack_reference(x, params_list, inp_lens):
    L = x.shape[1]
    x_stack, attns = [], []
    for i_len, params in zip(inp_lens, params_list):
        inp_len = L // (2 ** i_len)
        x_s, attn = _encoder_layer_reference(x[:, -inp_len:, :], params)
        x_stack.append(x_s)
        attns.append(attn)
    return jnp.concatenate(x_stack, axis=-2), attns


if __name__ == "__main__":
    # lane-dense demo shapes: D=128 keeps the last dim a full vreg lane width
    B, L, D, Dff = 2, 16, 128, 256
    inp_lens = [0, 1]  # encoders see lengths 16 and 8 -> stacked output length 24

    root = jax.random.PRNGKey(0)
    kx, kp = jax.random.split(root)
    x = jax.random.normal(kx, (B, L, D), jnp.float32)

    pkeys = jax.random.split(kp, len(inp_lens))
    params_list = [init_encoder_params(k, D, Dff) for k in pkeys]

    out, attns = encoder_stack_forward(x, params_list, inp_lens)
    out = jax.block_until_ready(out)
    attns = [jax.block_until_ready(a) for a in attns]

    assert out.shape == (B, L + L // 2, D), out.shape
    assert attns[0].shape == (B, L, L) and attns[1].shape == (B, L // 2, L // 2)

    # loose numerical check vs. a pure-JAX f32 reference (kernel matmuls run in bf16)
    ref_out, _ = encoder_stack_reference(x, params_list, inp_lens)
    err = float(jnp.max(jnp.abs(out - ref_out)))
    assert err < 1e-1, f"max abs err {err}"

    print("KERNEL_OK")
</pallas_src>

<mosaic_0001>
module attributes {stable_mosaic.version = 11 : i64} {
  func.func @encoder_layer_kernel(%arg0: i32, %arg1: memref<2x16x128xf32, #tpu.memory_space<vmem>>, %arg2: memref<128x384xbf16, #tpu.memory_space<vmem>>, %arg3: memref<1x384xf32, #tpu.memory_space<vmem>>, %arg4: memref<128x128xbf16, #tpu.memory_space<vmem>>, %arg5: memref<1x128xf32, #tpu.memory_space<vmem>>, %arg6: memref<1x128xf32, #tpu.memory_space<vmem>>, %arg7: memref<1x128xf32, #tpu.memory_space<vmem>>, %arg8: memref<128x256xbf16, #tpu.memory_space<vmem>>, %arg9: memref<1x256xf32, #tpu.memory_space<vmem>>, %arg10: memref<256x128xbf16, #tpu.memory_space<vmem>>, %arg11: memref<1x128xf32, #tpu.memory_space<vmem>>, %arg12: memref<1x128xf32, #tpu.memory_space<vmem>>, %arg13: memref<1x128xf32, #tpu.memory_space<vmem>>, %arg14: memref<2x16x128xf32, #tpu.memory_space<vmem>>, %arg15: memref<2x16x16xf32, #tpu.memory_space<vmem>>) attributes {dimension_semantics = [#tpu.dimension_semantics<arbitrary>], iteration_bounds = array<i64: 1>, scalar_prefetch = 0 : i64, scratch_operands = 0 : i64, tpu.core_type = #tpu.core_type<tc>, window_params = [{pipeline_mode = #tpu.pipeline_mode<synchronous>, transform_indices = @transform_0, window_bounds = array<i64: 2, 16, 128>}, {pipeline_mode = #tpu.pipeline_mode<synchronous>, transform_indices = @transform_1, window_bounds = array<i64: 128, 384>}, {pipeline_mode = #tpu.pipeline_mode<synchronous>, transform_indices = @transform_2, window_bounds = array<i64: 1, 384>}, {pipeline_mode = #tpu.pipeline_mode<synchronous>, transform_indices = @transform_3, window_bounds = array<i64: 128, 128>}, {pipeline_mode = #tpu.pipeline_mode<synchronous>, transform_indices = @transform_4, window_bounds = array<i64: 1, 128>}, {pipeline_mode = #tpu.pipeline_mode<synchronous>, transform_indices = @transform_5, window_bounds = array<i64: 1, 128>}, {pipeline_mode = #tpu.pipeline_mode<synchronous>, transform_indices = @transform_6, window_bounds = array<i64: 1, 128>}, {pipeline_mode = #tpu.pipeline_mode<synchronous>, transform_indices = @transform_7, window_bounds = array<i64: 128, 256>}, {pipeline_mode = #tpu.pipeline_mode<synchronous>, transform_indices = @transform_8, window_bounds = array<i64: 1, 256>}, {pipeline_mode = #tpu.pipeline_mode<synchronous>, transform_indices = @transform_9, window_bounds = array<i64: 256, 128>}, {pipeline_mode = #tpu.pipeline_mode<synchronous>, transform_indices = @transform_10, window_bounds = array<i64: 1, 128>}, {pipeline_mode = #tpu.pipeline_mode<synchronous>, transform_indices = @transform_11, window_bounds = array<i64: 1, 128>}, {pipeline_mode = #tpu.pipeline_mode<synchronous>, transform_indices = @transform_12, window_bounds = array<i64: 1, 128>}, {pipeline_mode = #tpu.pipeline_mode<synchronous>, transform_indices = @transform_13, window_bounds = array<i64: 2, 16, 128>}, {pipeline_mode = #tpu.pipeline_mode<synchronous>, transform_indices = @transform_14, window_bounds = array<i64: 2, 16, 16>}]} {
    %c0 = arith.constant 0 : index
    %c0_0 = arith.constant 0 : index
    %c0_1 = arith.constant 0 : index
    %0 = vector.load %arg1[%c0, %c0_0, %c0_1] : memref<2x16x128xf32, #tpu.memory_space<vmem>>, vector<2x16x128xf32>
    %1 = vector.shape_cast %0 : vector<2x16x128xf32> to vector<32x128xf32>
    %2 = arith.truncf %1 : vector<32x128xf32> to vector<32x128xbf16>
    %c0_2 = arith.constant 0 : index
    %c0_3 = arith.constant 0 : index
    %3 = vector.load %arg2[%c0_2, %c0_3] : memref<128x384xbf16, #tpu.memory_space<vmem>>, vector<128x384xbf16>
    %cst = arith.constant dense<0.000000e+00> : vector<32x384xf32>
    %4 = tpu.matmul %2, %3, %cst {dimension_numbers = #tpu.dot_dimension_numbers<[1], [0], [0], [1], [0, 0, 1, 1], [], []>} : vector<32x128xbf16>, vector<128x384xbf16>, vector<32x384xf32> -> vector<32x384xf32>
    %c0_4 = arith.constant 0 : index
    %c0_5 = arith.constant 0 : index
    %5 = vector.load %arg3[%c0_4, %c0_5] : memref<1x384xf32, #tpu.memory_space<vmem>>, vector<1x384xf32>
    %6 = vector.broadcast %5 : vector<1x384xf32> to vector<32x384xf32>
    %7 = arith.addf %4, %6 : vector<32x384xf32>
    %8 = vector.extract_strided_slice %7 {offsets = [0, 0], sizes = [32, 128], strides = [1, 1]} : vector<32x384xf32> to vector<32x128xf32>
    %9 = vector.shape_cast %8 : vector<32x128xf32> to vector<2x16x128xf32>
    %10 = vector.extract_strided_slice %7 {offsets = [0, 128], sizes = [32, 128], strides = [1, 1]} : vector<32x384xf32> to vector<32x128xf32>
    %11 = vector.shape_cast %10 : vector<32x128xf32> to vector<2x16x128xf32>
    %12 = vector.extract_strided_slice %7 {offsets = [0, 256], sizes = [32, 128], strides = [1, 1]} : vector<32x384xf32> to vector<32x128xf32>
    %13 = vector.shape_cast %12 : vector<32x128xf32> to vector<2x16x128xf32>
    %cst_6 = arith.constant 1.280000e+02 : f32
    %14 = math.sqrt %cst_6 : f32
    %cst_7 = arith.constant 1.000000e+00 : f32
    %15 = arith.divf %cst_7, %14 : f32
    %16 = arith.truncf %9 : vector<2x16x128xf32> to vector<2x16x128xbf16>
    %17 = arith.truncf %11 : vector<2x16x128xf32> to vector<2x16x128xbf16>
    %cst_8 = arith.constant dense<0.000000e+00> : vector<2x16x16xf32>
    %18 = tpu.matmul %16, %17, %cst_8 {dimension_numbers = #tpu.dot_dimension_numbers<[2], [2], [1], [1], [0, 0, 0, 1, 1, 1], [0], [0]>} : vector<2x16x128xbf16>, vector<2x16x128xbf16>, vector<2x16x16xf32> -> vector<2x16x16xf32>
    %19 = vector.broadcast %15 : f32 to vector<2x16x16xf32>
    %20 = arith.mulf %18, %19 : vector<2x16x16xf32>
    %cst_9 = arith.constant dense<0xFF800000> : vector<2x16xf32>
    %21 = vector.multi_reduction <maximumf>, %20, %cst_9 [2] : vector<2x16x16xf32> to vector<2x16xf32>
    %22 = vector.shape_cast %21 : vector<2x16xf32> to vector<2x16x1xf32>
    %23 = vector.broadcast %22 : vector<2x16x1xf32> to vector<2x16x16xf32>
    %24 = arith.subf %20, %23 : vector<2x16x16xf32>
    %25 = math.exp %24 : vector<2x16x16xf32>
    %cst_10 = arith.constant dense<0.000000e+00> : vector<2x16xf32>
    %26 = vector.multi_reduction <add>, %25, %cst_10 [2] : vector<2x16x16xf32> to vector<2x16xf32>
    %27 = vector.shape_cast %26 : vector<2x16xf32> to vector<2x16x1xf32>
    %28 = tpu.reciprocal %27 {approx = true} : vector<2x16x1xf32> -> vector<2x16x1xf32>
    %29 = vector.broadcast %28 : vector<2x16x1xf32> to vector<2x16x16xf32>
    %30 = arith.mulf %25, %29 : vector<2x16x16xf32>
    %31 = arith.truncf %30 : vector<2x16x16xf32> to vector<2x16x16xbf16>
    %32 = arith.truncf %13 : vector<2x16x128xf32> to vector<2x16x128xbf16>
    %cst_11 = arith.constant dense<0.000000e+00> : vector<2x16x128xf32>
    %33 = tpu.matmul %31, %32, %cst_11 {dimension_numbers = #tpu.dot_dimension_numbers<[2], [1], [1], [2], [0, 0, 0, 1, 1, 2], [0], [0]>} : vector<2x16x16xbf16>, vector<2x16x128xbf16>, vector<2x16x128xf32> -> vector<2x16x128xf32>
    %34 = vector.shape_cast %33 : vector<2x16x128xf32> to vector<32x128xf32>
    %35 = arith.truncf %34 : vector<32x128xf32> to vector<32x128xbf16>
    %c0_12 = arith.constant 0 : index
    %c0_13 = arith.constant 0 : index
    %36 = vector.load %arg4[%c0_12, %c0_13] : memref<128x128xbf16, #tpu.memory_space<vmem>>, vector<128x128xbf16>
    %cst_14 = arith.constant dense<0.000000e+00> : vector<32x128xf32>
    %37 = tpu.matmul %35, %36, %cst_14 {dimension_numbers = #tpu.dot_dimension_numbers<[1], [0], [0], [1], [0, 0, 1, 1], [], []>} : vector<32x128xbf16>, vector<128x128xbf16>, vector<32x128xf32> -> vector<32x128xf32>
    %c0_15 = arith.constant 0 : index
    %c0_16 = arith.constant 0 : index
    %38 = vector.load %arg5[%c0_15, %c0_16] : memref<1x128xf32, #tpu.memory_space<vmem>>, vector<1x128xf32>
    %39 = vector.broadcast %38 : vector<1x128xf32> to vector<32x128xf32>
    %40 = arith.addf %37, %39 : vector<32x128xf32>
    %41 = arith.addf %1, %40 : vector<32x128xf32>
    %c0_17 = arith.constant 0 : index
    %c0_18 = arith.constant 0 : index
    %42 = vector.load %arg6[%c0_17, %c0_18] : memref<1x128xf32, #tpu.memory_space<vmem>>, vector<1x128xf32>
    %c0_19 = arith.constant 0 : index
    %c0_20 = arith.constant 0 : index
    %43 = vector.load %arg7[%c0_19, %c0_20] : memref<1x128xf32, #tpu.memory_space<vmem>>, vector<1x128xf32>
    %cst_21 = arith.constant dense<0.000000e+00> : vector<32xf32>
    %44 = vector.multi_reduction <add>, %41, %cst_21 [1] : vector<32x128xf32> to vector<32xf32>
    %45 = vector.shape_cast %44 : vector<32xf32> to vector<32x1xf32>
    %cst_22 = arith.constant 1.280000e+02 : f32
    %46 = vector.broadcast %cst_22 : f32 to vector<32x1xf32>
    %47 = arith.divf %45, %46 : vector<32x1xf32>
    %48 = vector.broadcast %47 : vector<32x1xf32> to vector<32x128xf32>
    %49 = arith.subf %41, %48 : vector<32x128xf32>
    %50 = arith.mulf %49, %49 : vector<32x128xf32>
    %cst_23 = arith.constant dense<0.000000e+00> : vector<32xf32>
    %51 = vector.multi_reduction <add>, %50, %cst_23 [1] : vector<32x128xf32> to vector<32xf32>
    %52 = vector.shape_cast %51 : vector<32xf32> to vector<32x1xf32>
    %cst_24 = arith.constant 1.280000e+02 : f32
    %53 = vector.broadcast %cst_24 : f32 to vector<32x1xf32>
    %54 = arith.divf %52, %53 : vector<32x1xf32>
    %55 = vector.broadcast %47 : vector<32x1xf32> to vector<32x128xf32>
    %56 = arith.subf %41, %55 : vector<32x128xf32>
    %cst_25 = arith.constant 9.99999974E-6 : f32
    %57 = vector.broadcast %cst_25 : f32 to vector<32x1xf32>
    %58 = arith.addf %54, %57 : vector<32x1xf32>
    %59 = math.rsqrt %58 : vector<32x1xf32>
    %60 = vector.broadcast %59 : vector<32x1xf32> to vector<32x128xf32>
    %61 = arith.mulf %56, %60 : vector<32x128xf32>
    %62 = vector.broadcast %42 : vector<1x128xf32> to vector<32x128xf32>
    %63 = arith.mulf %61, %62 : vector<32x128xf32>
    %64 = vector.broadcast %43 : vector<1x128xf32> to vector<32x128xf32>
    %65 = arith.addf %63, %64 : vector<32x128xf32>
    %66 = arith.truncf %65 : vector<32x128xf32> to vector<32x128xbf16>
    %c0_26 = arith.constant 0 : index
    %c0_27 = arith.constant 0 : index
    %67 = vector.load %arg8[%c0_26, %c0_27] : memref<128x256xbf16, #tpu.memory_space<vmem>>, vector<128x256xbf16>
    %cst_28 = arith.constant dense<0.000000e+00> : vector<32x256xf32>
    %68 = tpu.matmul %66, %67, %cst_28 {dimension_numbers = #tpu.dot_dimension_numbers<[1], [0], [0], [1], [0, 0, 1, 1], [], []>} : vector<32x128xbf16>, vector<128x256xbf16>, vector<32x256xf32> -> vector<32x256xf32>
    %c0_29 = arith.constant 0 : index
    %c0_30 = arith.constant 0 : index
    %69 = vector.load %arg9[%c0_29, %c0_30] : memref<1x256xf32, #tpu.memory_space<vmem>>, vector<1x256xf32>
    %70 = vector.broadcast %69 : vector<1x256xf32> to vector<32x256xf32>
    %71 = arith.addf %68, %70 : vector<32x256xf32>
    %cst_31 = arith.constant 0.000000e+00 : f32
    %72 = vector.broadcast %cst_31 : f32 to vector<32x256xf32>
    %73 = arith.maximumf %71, %72 : vector<32x256xf32>
    %74 = arith.truncf %73 : vector<32x256xf32> to vector<32x256xbf16>
    %c0_32 = arith.constant 0 : index
    %c0_33 = arith.constant 0 : index
    %75 = vector.load %arg10[%c0_32, %c0_33] : memref<256x128xbf16, #tpu.memory_space<vmem>>, vector<256x128xbf16>
    %cst_34 = arith.constant dense<0.000000e+00> : vector<32x128xf32>
    %76 = tpu.matmul %74, %75, %cst_34 {dimension_numbers = #tpu.dot_dimension_numbers<[1], [0], [0], [1], [0, 0, 1, 1], [], []>} : vector<32x256xbf16>, vector<256x128xbf16>, vector<32x128xf32> -> vector<32x128xf32>
    %c0_35 = arith.constant 0 : index
    %c0_36 = arith.constant 0 : index
    %77 = vector.load %arg11[%c0_35, %c0_36] : memref<1x128xf32, #tpu.memory_space<vmem>>, vector<1x128xf32>
    %78 = vector.broadcast %77 : vector<1x128xf32> to vector<32x128xf32>
    %79 = arith.addf %76, %78 : vector<32x128xf32>
    %80 = arith.addf %65, %79 : vector<32x128xf32>
    %c0_37 = arith.constant 0 : index
    %c0_38 = arith.constant 0 : index
    %81 = vector.load %arg12[%c0_37, %c0_38] : memref<1x128xf32, #tpu.memory_space<vmem>>, vector<1x128xf32>
    %c0_39 = arith.constant 0 : index
    %c0_40 = arith.constant 0 : index
    %82 = vector.load %arg13[%c0_39, %c0_40] : memref<1x128xf32, #tpu.memory_space<vmem>>, vector<1x128xf32>
    %cst_41 = arith.constant dense<0.000000e+00> : vector<32xf32>
    %83 = vector.multi_reduction <add>, %80, %cst_41 [1] : vector<32x128xf32> to vector<32xf32>
    %84 = vector.shape_cast %83 : vector<32xf32> to vector<32x1xf32>
    %cst_42 = arith.constant 1.280000e+02 : f32
    %85 = vector.broadcast %cst_42 : f32 to vector<32x1xf32>
    %86 = arith.divf %84, %85 : vector<32x1xf32>
    %87 = vector.broadcast %86 : vector<32x1xf32> to vector<32x128xf32>
    %88 = arith.subf %80, %87 : vector<32x128xf32>
    %89 = arith.mulf %88, %88 : vector<32x128xf32>
    %cst_43 = arith.constant dense<0.000000e+00> : vector<32xf32>
    %90 = vector.multi_reduction <add>, %89, %cst_43 [1] : vector<32x128xf32> to vector<32xf32>
    %91 = vector.shape_cast %90 : vector<32xf32> to vector<32x1xf32>
    %cst_44 = arith.constant 1.280000e+02 : f32
    %92 = vector.broadcast %cst_44 : f32 to vector<32x1xf32>
    %93 = arith.divf %91, %92 : vector<32x1xf32>
    %94 = vector.broadcast %86 : vector<32x1xf32> to vector<32x128xf32>
    %95 = arith.subf %80, %94 : vector<32x128xf32>
    %cst_45 = arith.constant 9.99999974E-6 : f32
    %96 = vector.broadcast %cst_45 : f32 to vector<32x1xf32>
    %97 = arith.addf %93, %96 : vector<32x1xf32>
    %98 = math.rsqrt %97 : vector<32x1xf32>
    %99 = vector.broadcast %98 : vector<32x1xf32> to vector<32x128xf32>
    %100 = arith.mulf %95, %99 : vector<32x128xf32>
    %101 = vector.broadcast %81 : vector<1x128xf32> to vector<32x128xf32>
    %102 = arith.mulf %100, %101 : vector<32x128xf32>
    %103 = vector.broadcast %82 : vector<1x128xf32> to vector<32x128xf32>
    %104 = arith.addf %102, %103 : vector<32x128xf32>
    %105 = vector.shape_cast %104 : vector<32x128xf32> to vector<2x16x128xf32>
    %c0_46 = arith.constant 0 : index
    %c0_47 = arith.constant 0 : index
    %c0_48 = arith.constant 0 : index
    %106 = vector.load %arg14[%c0_46, %c0_47, %c0_48] : memref<2x16x128xf32, #tpu.memory_space<vmem>>, vector<2x16x128xf32>
    tpu.vector_store %arg14[%c0_46, %c0_47, %c0_48], %105 {strides = array<i32>} : memref<2x16x128xf32, #tpu.memory_space<vmem>>, vector<2x16x128xf32>,
    %c0_49 = arith.constant 0 : index
    %c0_50 = arith.constant 0 : index
    %c0_51 = arith.constant 0 : index
    %107 = vector.load %arg15[%c0_49, %c0_50, %c0_51] : memref<2x16x16xf32, #tpu.memory_space<vmem>>, vector<2x16x16xf32>
    tpu.vector_store %arg15[%c0_49, %c0_50, %c0_51], %30 {strides = array<i32>} : memref<2x16x16xf32, #tpu.memory_space<vmem>>, vector<2x16x16xf32>,
    return
  }
  func.func @transform_0(%arg0: i32) -> (i32, i32, i32) {
    %c0_i32 = arith.constant 0 : i32
    %c0_i32_0 = arith.constant 0 : i32
    %c0_i32_1 = arith.constant 0 : i32
    %c0_i32_2 = arith.constant 0 : i32
    return %c0_i32, %c0_i32_0, %c0_i32_1 : i32, i32, i32
  }
  func.func @transform_1(%arg0: i32) -> (i32, i32) {
    %c0_i32 = arith.constant 0 : i32
    %c0_i32_0 = arith.constant 0 : i32
    %c0_i32_1 = arith.constant 0 : i32
    return %c0_i32, %c0_i32_0 : i32, i32
  }
  func.func @transform_2(%arg0: i32) -> (i32, i32) {
    %c0_i32 = arith.constant 0 : i32
    %c0_i32_0 = arith.constant 0 : i32
    %c0_i32_1 = arith.constant 0 : i32
    return %c0_i32, %c0_i32_0 : i32, i32
  }
  func.func @transform_3(%arg0: i32) -> (i32, i32) {
    %c0_i32 = arith.constant 0 : i32
    %c0_i32_0 = arith.constant 0 : i32
    %c0_i32_1 = arith.constant 0 : i32
    return %c0_i32, %c0_i32_0 : i32, i32
  }
  func.func @transform_4(%arg0: i32) -> (i32, i32) {
    %c0_i32 = arith.constant 0 : i32
    %c0_i32_0 = arith.constant 0 : i32
    %c0_i32_1 = arith.constant 0 : i32
    return %c0_i32, %c0_i32_0 : i32, i32
  }
  func.func @transform_5(%arg0: i32) -> (i32, i32) {
    %c0_i32 = arith.constant 0 : i32
    %c0_i32_0 = arith.constant 0 : i32
    %c0_i32_1 = arith.constant 0 : i32
    return %c0_i32, %c0_i32_0 : i32, i32
  }
  func.func @transform_6(%arg0: i32) -> (i32, i32) {
    %c0_i32 = arith.constant 0 : i32
    %c0_i32_0 = arith.constant 0 : i32
    %c0_i32_1 = arith.constant 0 : i32
    return %c0_i32, %c0_i32_0 : i32, i32
  }
  func.func @transform_7(%arg0: i32) -> (i32, i32) {
    %c0_i32 = arith.constant 0 : i32
    %c0_i32_0 = arith.constant 0 : i32
    %c0_i32_1 = arith.constant 0 : i32
    return %c0_i32, %c0_i32_0 : i32, i32
  }
  func.func @transform_8(%arg0: i32) -> (i32, i32) {
    %c0_i32 = arith.constant 0 : i32
    %c0_i32_0 = arith.constant 0 : i32
    %c0_i32_1 = arith.constant 0 : i32
    return %c0_i32, %c0_i32_0 : i32, i32
  }
  func.func @transform_9(%arg0: i32) -> (i32, i32) {
    %c0_i32 = arith.constant 0 : i32
    %c0_i32_0 = arith.constant 0 : i32
    %c0_i32_1 = arith.constant 0 : i32
    return %c0_i32, %c0_i32_0 : i32, i32
  }
  func.func @transform_10(%arg0: i32) -> (i32, i32) {
    %c0_i32 = arith.constant 0 : i32
    %c0_i32_0 = arith.constant 0 : i32
    %c0_i32_1 = arith.constant 0 : i32
    return %c0_i32, %c0_i32_0 : i32, i32
  }
  func.func @transform_11(%arg0: i32) -> (i32, i32) {
    %c0_i32 = arith.constant 0 : i32
    %c0_i32_0 = arith.constant 0 : i32
    %c0_i32_1 = arith.constant 0 : i32
    return %c0_i32, %c0_i32_0 : i32, i32
  }
  func.func @transform_12(%arg0: i32) -> (i32, i32) {
    %c0_i32 = arith.constant 0 : i32
    %c0_i32_0 = arith.constant 0 : i32
    %c0_i32_1 = arith.constant 0 : i32
    return %c0_i32, %c0_i32_0 : i32, i32
  }
  func.func @transform_13(%arg0: i32) -> (i32, i32, i32) {
    %c0_i32 = arith.constant 0 : i32
    %c0_i32_0 = arith.constant 0 : i32
    %c0_i32_1 = arith.constant 0 : i32
    %c0_i32_2 = arith.constant 0 : i32
    return %c0_i32, %c0_i32_0, %c0_i32_1 : i32, i32, i32
  }
  func.func @transform_14(%arg0: i32) -> (i32, i32, i32) {
    %c0_i32 = arith.constant 0 : i32
    %c0_i32_0 = arith.constant 0 : i32
    %c0_i32_1 = arith.constant 0 : i32
    %c0_i32_2 = arith.constant 0 : i32
    return %c0_i32, %c0_i32_0, %c0_i32_1 : i32, i32, i32
  }
}

</mosaic_0001>

<llo_original>
// kernel: tpu_custom_call.1
$region0: #{tpu_custom_call.1}
  #allocation0 [shape = 'u32[]', space=smem, size = 0x4, offset = 0x4, fixed_abs, tag = 'smem constant byte address 0x4 - core index']
  #allocation1 [shape = 'u32[72,128]{1,0:T(1,128)}', space=vmem, size = 0x9000, scoped, tag = 'internal scratch']
  %s0 = inlined_call_operand.hbm [shape: f32[2,16,128], index: 0, kind: input, shape index: {}]
  %s1 = inlined_call_operand.hbm [shape: bf16[128,384], index: 1, kind: input, shape index: {}]
  %s2 = inlined_call_operand.hbm [shape: f32[1,384], index: 2, kind: input, shape index: {}]
  %s3 = inlined_call_operand.hbm [shape: bf16[128,128], index: 3, kind: input, shape index: {}]
  %s4 = inlined_call_operand.vmem [shape: f32[1,128], index: 4, kind: input, shape index: {}]
  %s5 = inlined_call_operand.vmem [shape: f32[1,128], index: 5, kind: input, shape index: {}]
  %s6 = inlined_call_operand.vmem [shape: f32[1,128], index: 6, kind: input, shape index: {}]
  %s7 = inlined_call_operand.hbm [shape: bf16[128,256], index: 7, kind: input, shape index: {}]
  %s8 = inlined_call_operand.vmem [shape: f32[1,256], index: 8, kind: input, shape index: {}]
  %s9 = inlined_call_operand.hbm [shape: bf16[256,128], index: 9, kind: input, shape index: {}]
  %s10 = inlined_call_operand.vmem [shape: f32[1,128], index: 10, kind: input, shape index: {}]
  %s11 = inlined_call_operand.vmem [shape: f32[1,128], index: 11, kind: input, shape index: {}]
  %s12 = inlined_call_operand.vmem [shape: f32[1,128], index: 12, kind: input, shape index: {}]
  %s13 = inlined_call_operand.hbm [shape: f32[2,16,128], index: 13, kind: output, shape index: {0}]
  %s14 = inlined_call_operand.hbm [shape: f32[2,16,16], index: 14, kind: output, shape index: {1}]
  %15 = xla_tuple %s13, %s14
  %s16 = sld [smem:[#allocation0]]
  $region94: #{tpu_custom_call.1} parent=0
    _
  %s18 = ssub.s32 1, %s16
  %s19 = scalar_select 0, %s18, %s16
  $region1: #{tpu_custom_call.1} parent=0
    #allocation2 [shape = 'u8[16384]{0}', space=vmem, size = 0x4000, scoped, tag = 'input window, operand 0, single buffered']
    #allocation3 [shape = 's32[1]{0}', space=sflag, size = 0x4, scoped, tag = 'scoped memory for tpu_custom_call.1']
    #allocation4 [shape = 's32[1]{0}', space=sflag, size = 0x4, scoped, tag = 'scoped memory for tpu_custom_call.1']
    #allocation5 [shape = 'u8[98304]{0}', space=vmem, size = 0x18000, scoped, tag = 'input window, operand 1, single buffered']
    #allocation6 [shape = 's32[1]{0}', space=sflag, size = 0x4, scoped, tag = 'scoped memory for tpu_custom_call.1']
    #allocation7 [shape = 'u8[1536]{0}', space=vmem, size = 0x800, scoped, tag = 'input window, operand 2, single buffered']
    #allocation8 [shape = 'u8[32768]{0}', space=vmem, size = 0x8000, scoped, tag = 'input window, operand 3, single buffered']
    #allocation9 [shape = 's32[1]{0}', space=sflag, size = 0x4, scoped, tag = 'scoped memory for tpu_custom_call.1']
    #allocation10 [shape = 'u8[65536]{0}', space=vmem, size = 0x10000, scoped, tag = 'input window, operand 7, single buffered']
    #allocation11 [shape = 'u8[65536]{0}', space=vmem, size = 0x10000, scoped, tag = 'input window, operand 9, single buffered']
    #allocation12 [shape = 's32[1]{0}', space=sflag, size = 0x4, scoped, tag = 'scoped memory for tpu_custom_call.1']
    #allocation13 [shape = 'u8[16384]{0}', space=vmem, size = 0x4000, scoped, tag = 'output window, operand 0, single buffered']
    #allocation14 [shape = 'u8[16384]{0}', space=vmem, size = 0x4000, scoped, tag = 'output window, operand 1, single buffered']
    #allocation15 [shape = 's32[1]{0}', space=sflag, size = 0x4, scoped, tag = 'scoped memory for tpu_custom_call.1']
    %20 = vsyncpa [#allocation3], 0
    %21 = vsyncpa [#allocation6], 0
    %22 = vsyncpa [#allocation9], 0
    %23 = vsyncpa [#allocation12], 0
    %24 = vsyncpa [#allocation4], 0
    %25 = vsyncpa [#allocation15], 0
    // Predicated region
    $region2: #{tpu_custom_call.1} parent=1 // pred_check
      _
    $region3: #{tpu_custom_call.1} parent=1 // pred_check_branch
      %27 = sbr.rel (0) target = $region5
    $region4: #{tpu_custom_call.1} parent=1 // pred_region
      %29 = vsyncadd [#allocation3], 0
      %s30 = sshll.u32 %s0, 4
      %s31 = int_to_ptr.hbm [resolvable:$true] %s30
      %s32 = sshll.u32 [#allocation2], 4
      %s33 = int_to_ptr.vmem [resolvable:$true] %s32
      %38 = dma.hbm_to_vmem [thread:$0]  %s31, 512, %s33, [#allocation3], 128, 128, 8
    $region5: #{tpu_custom_call.1} parent=1 // pred_fallthru
      _
    // Predicated region
    $region6: #{tpu_custom_call.1} parent=1 // pred_check
      _
    $region7: #{tpu_custom_call.1} parent=1 // pred_check_branch
      %40 = sbr.rel (0) target = $region9
    $region8: #{tpu_custom_call.1} parent=1 // pred_region
      %42 = vsyncadd [#allocation6], 0
      %s43 = sshll.u32 %s1, 4
      %s44 = int_to_ptr.hbm [resolvable:$true] %s43
      %s45 = sshll.u32 [#allocation5], 4
      %s46 = int_to_ptr.vmem [resolvable:$true] %s45
      %51 = dma.hbm_to_vmem [thread:$0]  %s44, 3072, %s46, [#allocation6], 192, 192, 12
    $region9: #{tpu_custom_call.1} parent=1 // pred_fallthru
      _
    // Predicated region
    $region10: #{tpu_custom_call.1} parent=1 // pred_check
      _
    $region11: #{tpu_custom_call.1} parent=1 // pred_check_branch
      %53 = sbr.rel (0) target = $region13
    $region12: #{tpu_custom_call.1} parent=1 // pred_region
      %55 = vsyncadd [#allocation6], 0
      %s57 = sshll.u32 %s2, 4
      %s58 = int_to_ptr.hbm [resolvable:$true] %s57
      %s59 = sshll.u32 [#allocation7], 4
      %s60 = int_to_ptr.vmem [resolvable:$true] %s59
      %62 = dma.hbm_to_vmem [thread:$0]  %s58, 48, %s60, [#allocation6]
    $region13: #{tpu_custom_call.1} parent=1 // pred_fallthru
      _
    // Predicated region
    $region14: #{tpu_custom_call.1} parent=1 // pred_check
      _
    $region15: #{tpu_custom_call.1} parent=1 // pred_check_branch
      %64 = sbr.rel (0) target = $region17
    $region16: #{tpu_custom_call.1} parent=1 // pred_region
      %66 = vsyncadd [#allocation9], 0
      %s67 = sshll.u32 %s3, 4
      %s68 = int_to_ptr.hbm [resolvable:$true] %s67
      %s69 = sshll.u32 [#allocation8], 4
      %s70 = int_to_ptr.vmem [resolvable:$true] %s69
      %75 = dma.hbm_to_vmem [thread:$0]  %s68, 1024, %s70, [#allocation9], 64, 64, 4
    $region17: #{tpu_custom_call.1} parent=1 // pred_fallthru
      _
    // Predicated region
    $region18: #{tpu_custom_call.1} parent=1 // pred_check
      _
    $region19: #{tpu_custom_call.1} parent=1 // pred_check_branch
      %77 = sbr.rel (0) target = $region21
    $region20: #{tpu_custom_call.1} parent=1 // pred_region
      _
    $region21: #{tpu_custom_call.1} parent=1 // pred_fallthru
      _
    // Predicated region
    $region22: #{tpu_custom_call.1} parent=1 // pred_check
      _
    $region23: #{tpu_custom_call.1} parent=1 // pred_check_branch
      %79 = sbr.rel (0) target = $region25
    $region24: #{tpu_custom_call.1} parent=1 // pred_region
      _
    $region25: #{tpu_custom_call.1} parent=1 // pred_fallthru
      _
    // Predicated region
    $region26: #{tpu_custom_call.1} parent=1 // pred_check
      _
    $region27: #{tpu_custom_call.1} parent=1 // pred_check_branch
      %81 = sbr.rel (0) target = $region29
    $region28: #{tpu_custom_call.1} parent=1 // pred_region
      _
    $region29: #{tpu_custom_call.1} parent=1 // pred_fallthru
      _
    // Predicated region
    $region30: #{tpu_custom_call.1} parent=1 // pred_check
      _
    $region31: #{tpu_custom_call.1} parent=1 // pred_check_branch
      %83 = sbr.rel (0) target = $region33
    $region32: #{tpu_custom_call.1} parent=1 // pred_region
      %85 = vsyncadd [#allocation9], 0
      %s86 = sshll.u32 %s7, 4
      %s87 = int_to_ptr.hbm [resolvable:$true] %s86
      %s88 = sshll.u32 [#allocation10], 4
      %s89 = int_to_ptr.vmem [resolvable:$true] %s88
      %94 = dma.hbm_to_vmem [thread:$0]  %s87, 2048, %s89, [#allocation9], 128, 128, 8
    $region33: #{tpu_custom_call.1} parent=1 // pred_fallthru
      _
    // Predicated region
    $region34: #{tpu_custom_call.1} parent=1 // pred_check
      _
    $region35: #{tpu_custom_call.1} parent=1 // pred_check_branch
      %96 = sbr.rel (0) target = $region37
    $region36: #{tpu_custom_call.1} parent=1 // pred_region
      _
    $region37: #{tpu_custom_call.1} parent=1 // pred_fallthru
      _
    // Predicated region
    $region38: #{tpu_custom_call.1} parent=1 // pred_check
      _
    $region39: #{tpu_custom_call.1} parent=1 // pred_check_branch
      %98 = sbr.rel (0) target = $region41
    $region40: #{tpu_custom_call.1} parent=1 // pred_region
      %100 = vsyncadd [#allocation12], 0
      %s101 = sshll.u32 %s9, 4
      %s102 = int_to_ptr.hbm [resolvable:$true] %s101
      %s103 = sshll.u32 [#allocation11], 4
      %s104 = int_to_ptr.vmem [resolvable:$true] %s103
      %109 = dma.hbm_to_vmem [thread:$0]  %s102, 2048, %s104, [#allocation12], 64, 64, 4
    $region41: #{tpu_custom_call.1} parent=1 // pred_fallthru
      _
    // Predicated region
    $region42: #{tpu_custom_call.1} parent=1 // pred_check
      _
    $region43: #{tpu_custom_call.1} parent=1 // pred_check_branch
      %111 = sbr.rel (0) target = $region45
    $region44: #{tpu_custom_call.1} parent=1 // pred_region
      _
    $region45: #{tpu_custom_call.1} parent=1 // pred_fallthru
      _
    // Predicated region
    $region46: #{tpu_custom_call.1} parent=1 // pred_check
      _
    $region47: #{tpu_custom_call.1} parent=1 // pred_check_branch
      %113 = sbr.rel (0) target = $region49
    $region48: #{tpu_custom_call.1} parent=1 // pred_region
      _
    $region49: #{tpu_custom_call.1} parent=1 // pred_fallthru
      _
    // Predicated region
    $region50: #{tpu_custom_call.1} parent=1 // pred_check
      _
    $region51: #{tpu_custom_call.1} parent=1 // pred_check_branch
      %115 = sbr.rel (0) target = $region53
    $region52: #{tpu_custom_call.1} parent=1 // pred_region
      _
    $region53: #{tpu_custom_call.1} parent=1 // pred_fallthru
      _
    // Predicated region
    $region54: #{tpu_custom_call.1} parent=1 // pred_check
      _
    $region55: #{tpu_custom_call.1} parent=1 // pred_check_branch
      %117 = sbr.rel (0) target = $region57
    $region56: #{tpu_custom_call.1} parent=1 // pred_region
      %119 = dma.done [#allocation3], 512
    $region57: #{tpu_custom_call.1} parent=1 // pred_fallthru
      _
    // Predicated region
    $region58: #{tpu_custom_call.1} parent=1 // pred_check
      _
    $region59: #{tpu_custom_call.1} parent=1 // pred_check_branch
      %121 = sbr.rel (0) target = $region61
    $region60: #{tpu_custom_call.1} parent=1 // pred_region
      %123 = dma.done [#allocation6], 3072
    $region61: #{tpu_custom_call.1} parent=1 // pred_fallthru
      _
    // Predicated region
    $region62: #{tpu_custom_call.1} parent=1 // pred_check
      _
    $region63: #{tpu_custom_call.1} parent=1 // pred_check_branch
      %125 = sbr.rel (0) target = $region65
    $region64: #{tpu_custom_call.1} parent=1 // pred_region
      %127 = dma.done [#allocation6], 48
    $region65: #{tpu_custom_call.1} parent=1 // pred_fallthru
      _
    // Predicated region
    $region66: #{tpu_custom_call.1} parent=1 // pred_check
      _
    $region67: #{tpu_custom_call.1} parent=1 // pred_check_branch
      %129 = sbr.rel (0) target = $region69
    $region68: #{tpu_custom_call.1} parent=1 // pred_region
      %131 = dma.done [#allocation9], 1024
    $region69: #{tpu_custom_call.1} parent=1 // pred_fallthru
      _
    // Predicated region
    $region70: #{tpu_custom_call.1} parent=1 // pred_check
      _
    $region71: #{tpu_custom_call.1} parent=1 // pred_check_branch
      %133 = sbr.rel (0) target = $region73
    $region72: #{tpu_custom_call.1} parent=1 // pred_region
      %135 = dma.done [#allocation9], 2048
    $region73: #{tpu_custom_call.1} parent=1 // pred_fallthru
      _
    // Predicated region
    $region74: #{tpu_custom_call.1} parent=1 // pred_check
      _
    $region75: #{tpu_custom_call.1} parent=1 // pred_check_branch
      %137 = sbr.rel (0) target = $region77
    $region76: #{tpu_custom_call.1} parent=1 // pred_region
      %139 = dma.done [#allocation12], 2048
    $region77: #{tpu_custom_call.1} parent=1 // pred_fallthru
      _
    %v141 = vld [vmem:[#allocation2] sm:$0xff]
    %v142 = vld [vmem:[#allocation2 + $0x8] sm:$0xff]
    %v143 = vld [vmem:[#allocation2 + $0x10] sm:$0xff]
    %v144 = vld [vmem:[#allocation2 + $0x18] sm:$0xff]
    %v145 = vpack.c.bf16 %v142, %v141
    %v146 = vpack.c.bf16 %v144, %v143
    %v147 = vld [vmem:[#allocation5] sm:$0xff]
    %v148 = vld [vmem:[#allocation5 + $0x8] sm:$0xf]
    %v149 = vld [vmem:[#allocation5 + $0xc] sm:$0xff]
    %v150 = vld [vmem:[#allocation5 + $0x14] sm:$0xf]
    %v151 = vld [vmem:[#allocation5 + $0x18] sm:$0xff]
    %v152 = vld [vmem:[#allocation5 + $0x20] sm:$0xf]
    %v153 = vld [vmem:[#allocation5 + $0x24] sm:$0xff]
    %v154 = vld [vmem:[#allocation5 + $0x2c] sm:$0xf]
    %v155 = vld [vmem:[#allocation5 + $0x30] sm:$0xff]
    %v156 = vld [vmem:[#allocation5 + $0x38] sm:$0xf]
    %v157 = vld [vmem:[#allocation5 + $0x3c] sm:$0xff]
    %v158 = vld [vmem:[#allocation5 + $0x44] sm:$0xf]
    %v159 = vld [vmem:[#allocation5 + $0x48] sm:$0xff]
    %v160 = vld [vmem:[#allocation5 + $0x50] sm:$0xf]
    %v161 = vld [vmem:[#allocation5 + $0x54] sm:$0xff]
    %v162 = vld [vmem:[#allocation5 + $0x5c] sm:$0xf]
    %v163 = vld [vmem:[#allocation5 + $0x60] sm:$0xff]
    %v164 = vld [vmem:[#allocation5 + $0x68] sm:$0xf]
    %v165 = vld [vmem:[#allocation5 + $0x6c] sm:$0xff]
    %v166 = vld [vmem:[#allocation5 + $0x74] sm:$0xf]
    %v167 = vld [vmem:[#allocation5 + $0x78] sm:$0xff]
    %v168 = vld [vmem:[#allocation5 + $0x80] sm:$0xf]
    %v169 = vld [vmem:[#allocation5 + $0x84] sm:$0xff]
    %v170 = vld [vmem:[#allocation5 + $0x8c] sm:$0xf]
    %v171 = vld [vmem:[#allocation5 + $0x90] sm:$0xff]
    %v172 = vld [vmem:[#allocation5 + $0x98] sm:$0xf]
    %v173 = vld [vmem:[#allocation5 + $0x9c] sm:$0xff]
    %v174 = vld [vmem:[#allocation5 + $0xa4] sm:$0xf]
    %v175 = vld [vmem:[#allocation5 + $0xa8] sm:$0xff]
    %v176 = vld [vmem:[#allocation5 + $0xb0] sm:$0xf]
    %v177 = vld [vmem:[#allocation5 + $0xb4] sm:$0xff]
    %v178 = vld [vmem:[#allocation5 + $0xbc] sm:$0xf]
    %v179 = vld [vmem:[#allocation7] sm:$0x7]
    %v181 = vperm.slane %v179, 0
    %v182 = vperm.slane %v179, 1
    %v183 = vperm.slane %v179, 2
    %v219 = vunpack.c.l.b16 %v147
    %v220 = vunpack.c.h.b16 %v147
    %v221 = vunpack.c.l.b16 %v148
    %v222 = vunpack.c.l.b16 %v149
    %v223 = vunpack.c.h.b16 %v149
    %v224 = vunpack.c.l.b16 %v150
    %v225 = vunpack.c.l.b16 %v151
    %v226 = vunpack.c.h.b16 %v151
    %v227 = vunpack.c.l.b16 %v152
    %v228 = vunpack.c.l.b16 %v153
    %v229 = vunpack.c.h.b16 %v153
    %v230 = vunpack.c.l.b16 %v154
    %v231 = vunpack.c.l.b16 %v155
    %v232 = vunpack.c.h.b16 %v155
    %v233 = vunpack.c.l.b16 %v156
    %v234 = vunpack.c.l.b16 %v157
    %v235 = vunpack.c.h.b16 %v157
    %v236 = vunpack.c.l.b16 %v158
    %v237 = vunpack.c.l.b16 %v159
    %v238 = vunpack.c.h.b16 %v159
    %v239 = vunpack.c.l.b16 %v160
    %v240 = vunpack.c.l.b16 %v161
    %v241 = vunpack.c.h.b16 %v161
    %v242 = vunpack.c.l.b16 %v162
    %v243 = vunpack.c.l.b16 %v163
    %v244 = vunpack.c.h.b16 %v163
    %v245 = vunpack.c.l.b16 %v164
    %v246 = vunpack.c.l.b16 %v165
    %v247 = vunpack.c.h.b16 %v165
    %v248 = vunpack.c.l.b16 %v166
    %v249 = vunpack.c.l.b16 %v167
    %v250 = vunpack.c.h.b16 %v167
    %v251 = vunpack.c.l.b16 %v168
    %v252 = vunpack.c.l.b16 %v169
    %v253 = vunpack.c.h.b16 %v169
    %v254 = vunpack.c.l.b16 %v170
    %v255 = vunpack.c.l.b16 %v171
    %v256 = vunpack.c.h.b16 %v171
    %v257 = vunpack.c.l.b16 %v172
    %v258 = vunpack.c.l.b16 %v173
    %v259 = vunpack.c.h.b16 %v173
    %v260 = vunpack.c.l.b16 %v174
    %v261 = vunpack.c.l.b16 %v175
    %v262 = vunpack.c.h.b16 %v175
    %v263 = vunpack.c.l.b16 %v176
    %v264 = vunpack.c.l.b16 %v177
    %v265 = vunpack.c.h.b16 %v177
    %v266 = vunpack.c.l.b16 %v178
    %v267 = vpack.c.b16 %v222, %v219
    %v268 = vpack.c.b16 %v223, %v220
    %v269 = vpack.c.b16 %v224, %v221
    %v270 = vpack.c.b16 %v228, %v225
    %v271 = vpack.c.b16 %v229, %v226
    %v272 = vpack.c.b16 %v230, %v227
    %v273 = vpack.c.b16 %v234, %v231
    %v274 = vpack.c.b16 %v235, %v232
    %v275 = vpack.c.b16 %v236, %v233
    %v276 = vpack.c.b16 %v240, %v237
    %v277 = vpack.c.b16 %v241, %v238
    %v278 = vpack.c.b16 %v242, %v239
    %v279 = vpack.c.b16 %v246, %v243
    %v280 = vpack.c.b16 %v247, %v244
    %v281 = vpack.c.b16 %v248, %v245
    %v282 = vpack.c.b16 %v252, %v249
    %v283 = vpack.c.b16 %v253, %v250
    %v284 = vpack.c.b16 %v254, %v251
    %v285 = vpack.c.b16 %v258, %v255
    %v286 = vpack.c.b16 %v259, %v256
    %v287 = vpack.c.b16 %v260, %v257
    %v288 = vpack.c.b16 %v264, %v261
    %v289 = vpack.c.b16 %v265, %v262
    %v290 = vpack.c.b16 %v266, %v263
    %315 = vmatpush.bf16.msra.mxu0 %v288
    %316 = vmatpush.bf16.msra.mxu0 %v285
    %317 = vmatpush.bf16.msra.mxu0 %v282
    %318 = vmatpush.bf16.msra.mxu0 %v279
    %319 = vmatpush.bf16.msra.mxu0 %v276
    %320 = vmatpush.bf16.msra.mxu0 %v273
    %321 = vmatpush.bf16.msra.mxu0 %v270
    %322 = vmatpush.bf16.msra.mxu0 %v267
    %323 = vmatmul.bf16.gmra.mxu0 %v145
    %v324 = vpop.f32.mrf.mxu0
    %v325 = vadd.f32 %v181, %v324
    %v326 = vpop.f32.mrf.mxu0
    %v327 = vadd.f32 %v181, %v326
    %328 = vmatmul.bf16.gmra.mxu0 %v146
    %v329 = vpop.f32.mrf.mxu0
    %v330 = vadd.f32 %v181, %v329
    %v331 = vpop.f32.mrf.mxu0
    %v332 = vadd.f32 %v181, %v331
    %333 = vdwg.mxu0
    %334 = vmatpush.bf16.msra.mxu0 %v289
    %335 = vmatpush.bf16.msra.mxu0 %v286
    %336 = vmatpush.bf16.msra.mxu0 %v283
    %337 = vmatpush.bf16.msra.mxu0 %v280
    %338 = vmatpush.bf16.msra.mxu0 %v277
    %339 = vmatpush.bf16.msra.mxu0 %v274
    %340 = vmatpush.bf16.msra.mxu0 %v271
    %341 = vmatpush.bf16.msra.mxu0 %v268
    %342 = vmatmul.bf16.gmra.mxu0 %v145
    %v343 = vpop.f32.mrf.mxu0
    %v344 = vadd.f32 %v182, %v343
    %v345 = vpop.f32.mrf.mxu0
    %v346 = vadd.f32 %v182, %v345
    %347 = vmatmul.bf16.gmra.mxu0 %v146
    %v348 = vpop.f32.mrf.mxu0
    %v349 = vadd.f32 %v182, %v348
    %v350 = vpop.f32.mrf.mxu0
    %v351 = vadd.f32 %v182, %v350
    %352 = vdwg.mxu0
    %353 = vmatpush.bf16.msra.mxu0 %v290
    %354 = vmatpush.bf16.msra.mxu0 %v287
    %355 = vmatpush.bf16.msra.mxu0 %v284
    %356 = vmatpush.bf16.msra.mxu0 %v281
    %357 = vmatpush.bf16.msra.mxu0 %v278
    %358 = vmatpush.bf16.msra.mxu0 %v275
    %359 = vmatpush.bf16.msra.mxu0 %v272
    %360 = vmatpush.bf16.msra.mxu0 %v269
    %361 = vmatmul.bf16.gmra.mxu0 %v145
    %v362 = vpop.f32.mrf.mxu0
    %v363 = vadd.f32 %v183, %v362
    %v364 = vpop.f32.mrf.mxu0
    %v365 = vadd.f32 %v183, %v364
    %366 = vmatmul.bf16.gmra.mxu0 %v146
    %v367 = vpop.f32.mrf.mxu0
    %v368 = vadd.f32 %v183, %v367
    %v369 = vpop.f32.mrf.mxu0
    %v370 = vadd.f32 %v183, %v369
    %371 = vdwg.mxu0
    %v372 = vpack.c.bf16 %v325, %v325
    %v373 = vpack.c.bf16 %v327, %v327
    %v374 = vpack.c.bf16 %v330, %v330
    %v375 = vpack.c.bf16 %v332, %v332
    %v376 = vpack.c.bf16 %v344, %v344
    %v377 = vpack.c.bf16 %v346, %v346
    %v378 = vpack.c.bf16 %v349, %v349
    %v379 = vpack.c.bf16 %v351, %v351
    %v382 = vunpack.c.l.b16 %v372
    %v383 = vunpack.c.l.b16 %v373
    %v384 = vpack.c.b16 %v383, %v382
    %v388 = vunpack.c.l.b16 %v376
    %v389 = vunpack.c.l.b16 %v377
    %v390 = vpack.c.b16 %v389, %v388
    %392 = vmatpush.bf16.xpose.msra.mxu0 0
    %393 = vmatpush.bf16.xpose.msra.mxu0 0
    %394 = vmatpush.bf16.xpose.msra.mxu0 0
    %395 = vmatpush.bf16.xpose.msra.mxu0 0
    %396 = vmatpush.bf16.xpose.msra.mxu0 0
    %397 = vmatpush.bf16.xpose.msra.mxu0 0
    %398 = vmatpush.bf16.xpose.msra.mxu0 0
    %399 = vmatpush.bf16.xpose.msra.mxu0 %v390
    %400 = vmatmul.bf16.gmra.mxu0 %v384
    %v401 = vpop.f32.mrf.mxu0
    %v402 = vadd.f32 0.0, %v401
    %v403 = vpop.f32.mrf.mxu0
    %v404 = vadd.f32 0.0, %v403
    %405 = vdwg.mxu0
    %v408 = vunpack.c.l.b16 %v374
    %v409 = vunpack.c.l.b16 %v375
    %v410 = vpack.c.b16 %v409, %v408
    %v414 = vunpack.c.l.b16 %v378
    %v415 = vunpack.c.l.b16 %v379
    %v416 = vpack.c.b16 %v415, %v414
    %418 = vmatpush.bf16.xpose.msra.mxu0 0
    %419 = vmatpush.bf16.xpose.msra.mxu0 0
    %420 = vmatpush.bf16.xpose.msra.mxu0 0
    %421 = vmatpush.bf16.xpose.msra.mxu0 0
    %422 = vmatpush.bf16.xpose.msra.mxu0 0
    %423 = vmatpush.bf16.xpose.msra.mxu0 0
    %424 = vmatpush.bf16.xpose.msra.mxu0 0
    %425 = vmatpush.bf16.xpose.msra.mxu0 %v416
    %426 = vmatmul.bf16.gmra.mxu0 %v410
    %v427 = vpop.f32.mrf.mxu0
    %v428 = vadd.f32 0.0, %v427
    %v429 = vpop.f32.mrf.mxu0
    %v430 = vadd.f32 0.0, %v429
    %431 = vdwg.mxu0
    %v432 = vmul.f32 %v402, 0.088388346
    %v433 = vmul.f32 %v404, 0.088388346
    %v434 = vmul.f32 %v428, 0.088388346
    %v435 = vmul.f32 %v430, 0.088388346
    %vm436 = vcmask 130048
    %v437 = vsel %vm436, %v432, -inf
    %438 = vmax.xlane.f32.xlu0 %v437
    %v439 = vpop.xlane.xlu0 %438
    %v440 = vsel %vm436, %v433, -inf
    %441 = vmax.xlane.f32.xlu0 %v440
    %v442 = vpop.xlane.xlu0 %441
    %v443 = vsel %vm436, %v434, -inf
    %444 = vmax.xlane.f32.xlu0 %v443
    %v445 = vpop.xlane.xlu0 %444
    %v446 = vsel %vm436, %v435, -inf
    %447 = vmax.xlane.f32.xlu0 %v446
    %v448 = vpop.xlane.xlu0 %447
    %v449 = vsub.f32 %v432, %v439
    %v450 = vsub.f32 %v433, %v442
    %v451 = vsub.f32 %v434, %v445
    %v452 = vsub.f32 %v435, %v448
    %v453 = vmul.f32 %v449, 1.442695
    %v454 = vpow.pop %v453
    %v455 = vmul.f32 %v450, 1.442695
    %v456 = vpow.pop %v455
    %v457 = vmul.f32 %v451, 1.442695
    %v458 = vpow.pop %v457
    %v459 = vmul.f32 %v452, 1.442695
    %v460 = vpow.pop %v459
    %v461 = vsel %vm436, %v454, 0.0
    %462 = vadd.xlane.f32.xlu0 %v461
    %v463 = vpop.xlane.xlu0 %462
    %v464 = vsel %vm436, %v456, 0.0
    %465 = vadd.xlane.f32.xlu0 %v464
    %v466 = vpop.xlane.xlu0 %465
    %v467 = vsel %vm436, %v458, 0.0
    %468 = vadd.xlane.f32.xlu0 %v467
    %v469 = vpop.xlane.xlu0 %468
    %v470 = vsel %vm436, %v460, 0.0
    %471 = vadd.xlane.f32.xlu0 %v470
    %v472 = vpop.xlane.xlu0 %471
    %v473 = vrcp.pop %v463
    %v474 = vrcp.pop %v466
    %v475 = vrcp.pop %v469
    %v476 = vrcp.pop %v472
    %v477 = vmul.f32 %v454, %v473
    %v478 = vmul.f32 %v456, %v474
    %v479 = vmul.f32 %v458, %v475
    %v480 = vmul.f32 %v460, %v476
    %v481 = vpack.c.bf16 %v477, %v477
    %v482 = vpack.c.bf16 %v478, %v478
    %v483 = vpack.c.bf16 %v479, %v479
    %v484 = vpack.c.bf16 %v480, %v480
    %v485 = vpack.c.bf16 %v363, %v363
    %v486 = vpack.c.bf16 %v365, %v365
    %v487 = vpack.c.bf16 %v368, %v368
    %v488 = vpack.c.bf16 %v370, %v370
    %v491 = vunpack.c.l.b16 %v481
    %v492 = vunpack.c.l.b16 %v482
    %v493 = vpack.c.b16 %v492, %v491
    %v496 = vunpack.c.l.b16 %v485
    %v497 = vunpack.c.l.b16 %v486
    %v498 = vpack.c.b16 %v497, %v496
    %v501 = vsel %vm436, %v493, 0
    %503 = vmatpush.bf16.msra.mxu0 0
    %504 = vmatpush.bf16.msra.mxu0 0
    %505 = vmatpush.bf16.msra.mxu0 0
    %506 = vmatpush.bf16.msra.mxu0 0
    %507 = vmatpush.bf16.msra.mxu0 0
    %508 = vmatpush.bf16.msra.mxu0 0
    %509 = vmatpush.bf16.msra.mxu0 0
    %510 = vmatpush.bf16.msra.mxu0 %v498
    %511 = vmatmul.bf16.gmra.mxu0 %v501
    %v512 = vpop.f32.mrf.mxu0
    %v513 = vadd.f32 0.0, %v512
    %v514 = vpop.f32.mrf.mxu0
    %v515 = vadd.f32 0.0, %v514
    %516 = vdwg.mxu0
    %v519 = vunpack.c.l.b16 %v483
    %v520 = vunpack.c.l.b16 %v484
    %v521 = vpack.c.b16 %v520, %v519
    %v524 = vunpack.c.l.b16 %v487
    %v525 = vunpack.c.l.b16 %v488
    %v526 = vpack.c.b16 %v525, %v524
    %v529 = vsel %vm436, %v521, 0
    %531 = vmatpush.bf16.msra.mxu0 0
    %532 = vmatpush.bf16.msra.mxu0 0
    %533 = vmatpush.bf16.msra.mxu0 0
    %534 = vmatpush.bf16.msra.mxu0 0
    %535 = vmatpush.bf16.msra.mxu0 0
    %536 = vmatpush.bf16.msra.mxu0 0
    %537 = vmatpush.bf16.msra.mxu0 0
    %538 = vmatpush.bf16.msra.mxu0 %v526
    %539 = vmatmul.bf16.gmra.mxu0 %v529
    %v540 = vpop.f32.mrf.mxu0
    %v541 = vadd.f32 0.0, %v540
    %v542 = vpop.f32.mrf.mxu0
    %v543 = vadd.f32 0.0, %v542
    %544 = vdwg.mxu0
    %v545 = vpack.c.bf16 %v515, %v513
    %v546 = vpack.c.bf16 %v543, %v541
    %v547 = vld [vmem:[#allocation8] sm:$0xf]
    %v548 = vld [vmem:[#allocation8 + $0x4] sm:$0xf]
    %v549 = vld [vmem:[#allocation8 + $0x8] sm:$0xf]
    %v550 = vld [vmem:[#allocation8 + $0xc] sm:$0xf]
    %v551 = vld [vmem:[#allocation8 + $0x10] sm:$0xf]
    %v552 = vld [vmem:[#allocation8 + $0x14] sm:$0xf]
    %v553 = vld [vmem:[#allocation8 + $0x18] sm:$0xf]
    %v554 = vld [vmem:[#allocation8 + $0x1c] sm:$0xf]
    %v555 = vld [vmem:[#allocation8 + $0x20] sm:$0xf]
    %v556 = vld [vmem:[#allocation8 + $0x24] sm:$0xf]
    %v557 = vld [vmem:[#allocation8 + $0x28] sm:$0xf]
    %v558 = vld [vmem:[#allocation8 + $0x2c] sm:$0xf]
    %v559 = vld [vmem:[#allocation8 + $0x30] sm:$0xf]
    %v560 = vld [vmem:[#allocation8 + $0x34] sm:$0xf]
    %v561 = vld [vmem:[#allocation8 + $0x38] sm:$0xf]
    %v562 = vld [vmem:[#allocation8 + $0x3c] sm:$0xf]
    %v563 = vld [vmem:[%s4] sm:$0x1]
    %v565 = vperm.slane %v563, 0
    %v583 = vunpack.c.l.b16 %v547
    %v584 = vunpack.c.l.b16 %v548
    %v585 = vunpack.c.l.b16 %v549
    %v586 = vunpack.c.l.b16 %v550
    %v587 = vunpack.c.l.b16 %v551
    %v588 = vunpack.c.l.b16 %v552
    %v589 = vunpack.c.l.b16 %v553
    %v590 = vunpack.c.l.b16 %v554
    %v591 = vunpack.c.l.b16 %v555
    %v592 = vunpack.c.l.b16 %v556
    %v593 = vunpack.c.l.b16 %v557
    %v594 = vunpack.c.l.b16 %v558
    %v595 = vunpack.c.l.b16 %v559
    %v596 = vunpack.c.l.b16 %v560
    %v597 = vunpack.c.l.b16 %v561
    %v598 = vunpack.c.l.b16 %v562
    %v599 = vpack.c.b16 %v584, %v583
    %v600 = vpack.c.b16 %v586, %v585
    %v601 = vpack.c.b16 %v588, %v587
    %v602 = vpack.c.b16 %v590, %v589
    %v603 = vpack.c.b16 %v592, %v591
    %v604 = vpack.c.b16 %v594, %v593
    %v605 = vpack.c.b16 %v596, %v595
    %v606 = vpack.c.b16 %v598, %v597
    %615 = vmatpush.bf16.msra.mxu0 %v606
    %616 = vmatpush.bf16.msra.mxu0 %v605
    %617 = vmatpush.bf16.msra.mxu0 %v604
    %618 = vmatpush.bf16.msra.mxu0 %v603
    %619 = vmatpush.bf16.msra.mxu0 %v602
    %620 = vmatpush.bf16.msra.mxu0 %v601
    %621 = vmatpush.bf16.msra.mxu0 %v600
    %622 = vmatpush.bf16.msra.mxu0 %v599
    %623 = vmatmul.bf16.gmra.mxu0 %v545
    %v624 = vpop.f32.mrf.mxu0
    %v625 = vadd.f32 %v565, %v624
    %v626 = vpop.f32.mrf.mxu0
    %v627 = vadd.f32 %v565, %v626
    %628 = vmatmul.bf16.gmra.mxu0 %v546
    %v629 = vpop.f32.mrf.mxu0
    %v630 = vadd.f32 %v565, %v629
    %v631 = vpop.f32.mrf.mxu0
    %v632 = vadd.f32 %v565, %v631
    %633 = vdwg.mxu0
    %v634 = vadd.f32 %v141, %v625
    %v635 = vadd.f32 %v142, %v627
    %v636 = vadd.f32 %v143, %v630
    %v637 = vadd.f32 %v144, %v632
    %v638 = vld [vmem:[%s5] sm:$0x1]
    %v639 = vld [vmem:[%s6] sm:$0x1]
    %640 = vadd.xlane.f32.xlu0 %v634
    %v641 = vpop.xlane.xlu0 %640
    %642 = vadd.xlane.f32.xlu0 %v635
    %v643 = vpop.xlane.xlu0 %642
    %644 = vadd.xlane.f32.xlu0 %v636
    %v645 = vpop.xlane.xlu0 %644
    %646 = vadd.xlane.f32.xlu0 %v637
    %v647 = vpop.xlane.xlu0 %646
    %v648 = vrcp.pop 128.0
    %v649 = vmul.f32 128.0, %v648
    %v650 = vsub.f32 1.0, %v649
    %v651 = vmul.f32 %v648, %v650
    %v652 = vadd.f32 %v648, %v651
    %vm653 = vweird.f32 %v648
    %v654 = vsel %vm653, %v648, %v652
    %v655 = vmul.f32 %v641, %v654
    %v656 = vmul.f32 %v643, %v654
    %v657 = vmul.f32 %v645, %v654
    %v658 = vmul.f32 %v647, %v654
    %v659 = vsub.f32 %v634, %v655
    %v660 = vsub.f32 %v635, %v656
    %v661 = vsub.f32 %v636, %v657
    %v662 = vsub.f32 %v637, %v658
    %v663 = vmul.f32 %v659, %v659
    %v664 = vmul.f32 %v660, %v660
    %v665 = vmul.f32 %v661, %v661
    %v666 = vmul.f32 %v662, %v662
    %667 = vadd.xlane.f32.xlu0 %v663
    %v668 = vpop.xlane.xlu0 %667
    %669 = vadd.xlane.f32.xlu0 %v664
    %v670 = vpop.xlane.xlu0 %669
    %671 = vadd.xlane.f32.xlu0 %v665
    %v672 = vpop.xlane.xlu0 %671
    %673 = vadd.xlane.f32.xlu0 %v666
    %v674 = vpop.xlane.xlu0 %673
    %v675 = vmul.f32 %v668, %v654
    %v676 = vmul.f32 %v670, %v654
    %v677 = vmul.f32 %v672, %v654
    %v678 = vmul.f32 %v674, %v654
    %v679 = vadd.f32 %v675, 1e-05
    %v680 = vadd.f32 %v676, 1e-05
    %v681 = vadd.f32 %v677, 1e-05
    %v682 = vadd.f32 %v678, 1e-05
    %v683 = vrsqrt.pop %v679
    %v684 = vmul.f32 %v683, %v679
    %v685 = vmul.f32 %v684, %v683
    %v686 = vmul.f32 0.5, %v685
    %v687 = vsub.f32 1.5, %v686
    %v688 = vmul.f32 %v683, %v687
    %vm689 = vweird.f32 %v679
    %vm690 = vweird.f32 %v683
    %vm691 = vmor %vm689, %vm690
    %v692 = vsel %vm691, %v683, %v688
    %v693 = vrsqrt.pop %v680
    %v694 = vmul.f32 %v693, %v680
    %v695 = vmul.f32 %v694, %v693
    %v696 = vmul.f32 0.5, %v695
    %v697 = vsub.f32 1.5, %v696
    %v698 = vmul.f32 %v693, %v697
    %vm699 = vweird.f32 %v680
    %vm700 = vweird.f32 %v693
    %vm701 = vmor %vm699, %vm700
    %v702 = vsel %vm701, %v693, %v698
    %v703 = vrsqrt.pop %v681
    %v704 = vmul.f32 %v703, %v681
    %v705 = vmul.f32 %v704, %v703
    %v706 = vmul.f32 0.5, %v705
    %v707 = vsub.f32 1.5, %v706
    %v708 = vmul.f32 %v703, %v707
    %vm709 = vweird.f32 %v681
    %vm710 = vweird.f32 %v703
    %vm711 = vmor %vm709, %vm710
    %v712 = vsel %vm711, %v703, %v708
    %v713 = vrsqrt.pop %v682
    %v714 = vmul.f32 %v713, %v682
    %v715 = vmul.f32 %v714, %v713
    %v716 = vmul.f32 0.5, %v715
    %v717 = vsub.f32 1.5, %v716
    %v718 = vmul.f32 %v713, %v717
    %vm719 = vweird.f32 %v682
    %vm720 = vweird.f32 %v713
    %vm721 = vmor %vm719, %vm720
    %v722 = vsel %vm721, %v713, %v718
    %v723 = vmul.f32 %v659, %v692
    %v724 = vmul.f32 %v660, %v702
    %v725 = vmul.f32 %v661, %v712
    %v726 = vmul.f32 %v662, %v722
    %v728 = vperm.slane %v638, 0
    %v730 = vmul.f32 %v723, %v728
    %v731 = vmul.f32 %v724, %v728
    %v732 = vmul.f32 %v725, %v728
    %v733 = vmul.f32 %v726, %v728
    %v735 = vperm.slane %v639, 0
    %v737 = vadd.f32 %v730, %v735
    %v738 = vadd.f32 %v731, %v735
    %v739 = vadd.f32 %v732, %v735
    %v740 = vadd.f32 %v733, %v735
    %v741 = vpack.c.bf16 %v738, %v737
    %v742 = vpack.c.bf16 %v740, %v739
    %v743 = vld [vmem:[#allocation10] sm:$0xff]
    %v744 = vld [vmem:[#allocation10 + $0x8] sm:$0xff]
    %v745 = vld [vmem:[#allocation10 + $0x10] sm:$0xff]
    %v746 = vld [vmem:[#allocation10 + $0x18] sm:$0xff]
    %v747 = vld [vmem:[#allocation10 + $0x20] sm:$0xff]
    %v748 = vld [vmem:[#allocation10 + $0x28] sm:$0xff]
    %v749 = vld [vmem:[#allocation10 + $0x30] sm:$0xff]
    %v750 = vld [vmem:[#allocation10 + $0x38] sm:$0xff]
    %v751 = vld [vmem:[#allocation10 + $0x40] sm:$0xff]
    %v752 = vld [vmem:[#allocation10 + $0x48] sm:$0xff]
    %v753 = vld [vmem:[#allocation10 + $0x50] sm:$0xff]
    %v754 = vld [vmem:[#allocation10 + $0x58] sm:$0xff]
    %v755 = vld [vmem:[#allocation10 + $0x60] sm:$0xff]
    %v756 = vld [vmem:[#allocation10 + $0x68] sm:$0xff]
    %v757 = vld [vmem:[#allocation10 + $0x70] sm:$0xff]
    %v758 = vld [vmem:[#allocation10 + $0x78] sm:$0xff]
    %v759 = vld [vmem:[%s8] sm:$0x3]
    %v761 = vperm.slane %v759, 0
    %v762 = vperm.slane %v759, 1
    %v781 = vunpack.c.l.b16 %v743
    %v782 = vunpack.c.h.b16 %v743
    %v783 = vunpack.c.l.b16 %v744
    %v784 = vunpack.c.h.b16 %v744
    %v785 = vunpack.c.l.b16 %v745
    %v786 = vunpack.c.h.b16 %v745
    %v787 = vunpack.c.l.b16 %v746
    %v788 = vunpack.c.h.b16 %v746
    %v789 = vunpack.c.l.b16 %v747
    %v790 = vunpack.c.h.b16 %v747
    %v791 = vunpack.c.l.b16 %v748
    %v792 = vunpack.c.h.b16 %v748
    %v793 = vunpack.c.l.b16 %v749
    %v794 = vunpack.c.h.b16 %v749
    %v795 = vunpack.c.l.b16 %v750
    %v796 = vunpack.c.h.b16 %v750
    %v797 = vunpack.c.l.b16 %v751
    %v798 = vunpack.c.h.b16 %v751
    %v799 = vunpack.c.l.b16 %v752
    %v800 = vunpack.c.h.b16 %v752
    %v801 = vunpack.c.l.b16 %v753
    %v802 = vunpack.c.h.b16 %v753
    %v803 = vunpack.c.l.b16 %v754
    %v804 = vunpack.c.h.b16 %v754
    %v805 = vunpack.c.l.b16 %v755
    %v806 = vunpack.c.h.b16 %v755
    %v807 = vunpack.c.l.b16 %v756
    %v808 = vunpack.c.h.b16 %v756
    %v809 = vunpack.c.l.b16 %v757
    %v810 = vunpack.c.h.b16 %v757
    %v811 = vunpack.c.l.b16 %v758
    %v812 = vunpack.c.h.b16 %v758
    %v813 = vpack.c.b16 %v783, %v781
    %v814 = vpack.c.b16 %v784, %v782
    %v815 = vpack.c.b16 %v787, %v785
    %v816 = vpack.c.b16 %v788, %v786
    %v817 = vpack.c.b16 %v791, %v789
    %v818 = vpack.c.b16 %v792, %v790
    %v819 = vpack.c.b16 %v795, %v793
    %v820 = vpack.c.b16 %v796, %v794
    %v821 = vpack.c.b16 %v799, %v797
    %v822 = vpack.c.b16 %v800, %v798
    %v823 = vpack.c.b16 %v803, %v801
    %v824 = vpack.c.b16 %v804, %v802
    %v825 = vpack.c.b16 %v807, %v805
    %v826 = vpack.c.b16 %v808, %v806
    %v827 = vpack.c.b16 %v811, %v809
    %v828 = vpack.c.b16 %v812, %v810
    %845 = vmatpush.bf16.msra.mxu0 %v827
    %846 = vmatpush.bf16.msra.mxu0 %v825
    %847 = vmatpush.bf16.msra.mxu0 %v823
    %848 = vmatpush.bf16.msra.mxu0 %v821
    %849 = vmatpush.bf16.msra.mxu0 %v819
    %850 = vmatpush.bf16.msra.mxu0 %v817
    %851 = vmatpush.bf16.msra.mxu0 %v815
    %852 = vmatpush.bf16.msra.mxu0 %v813
    %853 = vmatmul.bf16.gmra.mxu0 %v741
    %v854 = vpop.f32.mrf.mxu0
    %v855 = vadd.f32 %v761, %v854
    %v856 = vpop.f32.mrf.mxu0
    %v857 = vadd.f32 %v761, %v856
    %858 = vmatmul.bf16.gmra.mxu0 %v742
    %v859 = vpop.f32.mrf.mxu0
    %v860 = vadd.f32 %v761, %v859
    %v861 = vpop.f32.mrf.mxu0
    %v862 = vadd.f32 %v761, %v861
    %863 = vdwg.mxu0
    %864 = vmatpush.bf16.msra.mxu0 %v828
    %865 = vmatpush.bf16.msra.mxu0 %v826
    %866 = vmatpush.bf16.msra.mxu0 %v824
    %867 = vmatpush.bf16.msra.mxu0 %v822
    %868 = vmatpush.bf16.msra.mxu0 %v820
    %869 = vmatpush.bf16.msra.mxu0 %v818
    %870 = vmatpush.bf16.msra.mxu0 %v816
    %871 = vmatpush.bf16.msra.mxu0 %v814
    %872 = vmatmul.bf16.gmra.mxu0 %v741
    %v873 = vpop.f32.mrf.mxu0
    %v874 = vadd.f32 %v762, %v873
    %v875 = vpop.f32.mrf.mxu0
    %v876 = vadd.f32 %v762, %v875
    %877 = vmatmul.bf16.gmra.mxu0 %v742
    %v878 = vpop.f32.mrf.mxu0
    %v879 = vadd.f32 %v762, %v878
    %v880 = vpop.f32.mrf.mxu0
    %v881 = vadd.f32 %v762, %v880
    %882 = vdwg.mxu0
    %v883 = vmax.f32 %v855, 0.0
    %v884 = vmax.f32 %v874, 0.0
    %v885 = vmax.f32 %v857, 0.0
    %v886 = vmax.f32 %v876, 0.0
    %v887 = vmax.f32 %v860, 0.0
    %v888 = vmax.f32 %v879, 0.0
    %v889 = vmax.f32 %v862, 0.0
    %v890 = vmax.f32 %v881, 0.0
    %v891 = vpack.c.bf16 %v885, %v883
    %v892 = vpack.c.bf16 %v886, %v884
    %v893 = vpack.c.bf16 %v889, %v887
    %v894 = vpack.c.bf16 %v890, %v888
    %v895 = vld [vmem:[#allocation11] sm:$0xf]
    %v896 = vld [vmem:[#allocation11 + $0x4] sm:$0xf]
    %v897 = vld [vmem:[#allocation11 + $0x8] sm:$0xf]
    %v898 = vld [vmem:[#allocation11 + $0xc] sm:$0xf]
    %v899 = vld [vmem:[#allocation11 + $0x10] sm:$0xf]
    %v900 = vld [vmem:[#allocation11 + $0x14] sm:$0xf]
    %v901 = vld [vmem:[#allocation11 + $0x18] sm:$0xf]
    %v902 = vld [vmem:[#allocation11 + $0x1c] sm:$0xf]
    %v903 = vld [vmem:[#allocation11 + $0x20] sm:$0xf]
    %v904 = vld [vmem:[#allocation11 + $0x24] sm:$0xf]
    %v905 = vld [vmem:[#allocation11 + $0x28] sm:$0xf]
    %v906 = vld [vmem:[#allocation11 + $0x2c] sm:$0xf]
    %v907 = vld [vmem:[#allocation11 + $0x30] sm:$0xf]
    %v908 = vld [vmem:[#allocation11 + $0x34] sm:$0xf]
    %v909 = vld [vmem:[#allocation11 + $0x38] sm:$0xf]
    %v910 = vld [vmem:[#allocation11 + $0x3c] sm:$0xf]
    %v911 = vld [vmem:[#allocation11 + $0x40] sm:$0xf]
    %v912 = vld [vmem:[#allocation11 + $0x44] sm:$0xf]
    %v913 = vld [vmem:[#allocation11 + $0x48] sm:$0xf]
    %v914 = vld [vmem:[#allocation11 + $0x4c] sm:$0xf]
    %v915 = vld [vmem:[#allocation11 + $0x50] sm:$0xf]
    %v916 = vld [vmem:[#allocation11 + $0x54] sm:$0xf]
    %v917 = vld [vmem:[#allocation11 + $0x58] sm:$0xf]
    %v918 = vld [vmem:[#allocation11 + $0x5c] sm:$0xf]
    %v919 = vld [vmem:[#allocation11 + $0x60] sm:$0xf]
    %v920 = vld [vmem:[#allocation11 + $0x64] sm:$0xf]
    %v921 = vld [vmem:[#allocation11 + $0x68] sm:$0xf]
    %v922 = vld [vmem:[#allocation11 + $0x6c] sm:$0xf]
    %v923 = vld [vmem:[#allocation11 + $0x70] sm:$0xf]
    %v924 = vld [vmem:[#allocation11 + $0x74] sm:$0xf]
    %v925 = vld [vmem:[#allocation11 + $0x78] sm:$0xf]
    %v926 = vld [vmem:[#allocation11 + $0x7c] sm:$0xf]
    %v927 = vld [vmem:[%s10] sm:$0x1]
    %v929 = vperm.slane %v927, 0
    %v963 = vunpack.c.l.b16 %v895
    %v964 = vunpack.c.l.b16 %v896
    %v965 = vunpack.c.l.b16 %v897
    %v966 = vunpack.c.l.b16 %v898
    %v967 = vunpack.c.l.b16 %v899
    %v968 = vunpack.c.l.b16 %v900
    %v969 = vunpack.c.l.b16 %v901
    %v970 = vunpack.c.l.b16 %v902
    %v971 = vunpack.c.l.b16 %v903
    %v972 = vunpack.c.l.b16 %v904
    %v973 = vunpack.c.l.b16 %v905
    %v974 = vunpack.c.l.b16 %v906
    %v975 = vunpack.c.l.b16 %v907
    %v976 = vunpack.c.l.b16 %v908
    %v977 = vunpack.c.l.b16 %v909
    %v978 = vunpack.c.l.b16 %v910
    %v979 = vunpack.c.l.b16 %v911
    %v980 = vunpack.c.l.b16 %v912
    %v981 = vunpack.c.l.b16 %v913
    %v982 = vunpack.c.l.b16 %v914
    %v983 = vunpack.c.l.b16 %v915
    %v984 = vunpack.c.l.b16 %v916
    %v985 = vunpack.c.l.b16 %v917
    %v986 = vunpack.c.l.b16 %v918
    %v987 = vunpack.c.l.b16 %v919
    %v988 = vunpack.c.l.b16 %v920
    %v989 = vunpack.c.l.b16 %v921
    %v990 = vunpack.c.l.b16 %v922
    %v991 = vunpack.c.l.b16 %v923
    %v992 = vunpack.c.l.b16 %v924
    %v993 = vunpack.c.l.b16 %v925
    %v994 = vunpack.c.l.b16 %v926
    %v995 = vpack.c.b16 %v964, %v963
    %v996 = vpack.c.b16 %v966, %v965
    %v997 = vpack.c.b16 %v968, %v967
    %v998 = vpack.c.b16 %v970, %v969
    %v999 = vpack.c.b16 %v972, %v971
    %v1000 = vpack.c.b16 %v974, %v973
    %v1001 = vpack.c.b16 %v976, %v975
    %v1002 = vpack.c.b16 %v978, %v977
    %v1003 = vpack.c.b16 %v980, %v979
    %v1004 = vpack.c.b16 %v982, %v981
    %v1005 = vpack.c.b16 %v984, %v983
    %v1006 = vpack.c.b16 %v986, %v985
    %v1007 = vpack.c.b16 %v988, %v987
    %v1008 = vpack.c.b16 %v990, %v989
    %v1009 = vpack.c.b16 %v992, %v991
    %v1010 = vpack.c.b16 %v994, %v993
    %1027 = vmatpush.bf16.msra.mxu0 %v1002
    %1028 = vmatpush.bf16.msra.mxu0 %v1001
    %1029 = vmatpush.bf16.msra.mxu0 %v1000
    %1030 = vmatpush.bf16.msra.mxu0 %v999
    %1031 = vmatpush.bf16.msra.mxu0 %v998
    %1032 = vmatpush.bf16.msra.mxu0 %v997
    %1033 = vmatpush.bf16.msra.mxu0 %v996
    %1034 = vmatpush.bf16.msra.mxu0 %v995
    %1035 = vmatmul.bf16.gmra.mxu0 %v891
    %v1036 = vpop.f32.mrf.mxu0
    %v1037 = vadd.f32 %v929, %v1036
    %v1038 = vpop.f32.mrf.mxu0
    %v1039 = vadd.f32 %v929, %v1038
    %1040 = vmatmul.bf16.gmra.mxu0 %v893
    %v1041 = vpop.f32.mrf.mxu0
    %v1042 = vadd.f32 %v929, %v1041
    %v1043 = vpop.f32.mrf.mxu0
    %v1044 = vadd.f32 %v929, %v1043
    %1045 = vdwg.mxu0
    %1046 = vmatpush.bf16.msra.mxu0 %v1010
    %1047 = vmatpush.bf16.msra.mxu0 %v1009
    %1048 = vmatpush.bf16.msra.mxu0 %v1008
    %1049 = vmatpush.bf16.msra.mxu0 %v1007
    %1050 = vmatpush.bf16.msra.mxu0 %v1006
    %1051 = vmatpush.bf16.msra.mxu0 %v1005
    %1052 = vmatpush.bf16.msra.mxu0 %v1004
    %1053 = vmatpush.bf16.msra.mxu0 %v1003
    %1054 = vmatmul.bf16.gmra.mxu0 %v892
    %v1055 = vpop.f32.mrf.mxu0
    %v1056 = vadd.f32 %v1037, %v1055
    %v1057 = vpop.f32.mrf.mxu0
    %v1058 = vadd.f32 %v1039, %v1057
    %1059 = vmatmul.bf16.gmra.mxu0 %v894
    %v1060 = vpop.f32.mrf.mxu0
    %v1061 = vadd.f32 %v1042, %v1060
    %v1062 = vpop.f32.mrf.mxu0
    %v1063 = vadd.f32 %v1044, %v1062
    %1064 = vdwg.mxu0
    %v1065 = vadd.f32 %v737, %v1056
    %v1066 = vadd.f32 %v738, %v1058
    %v1067 = vadd.f32 %v739, %v1061
    %v1068 = vadd.f32 %v740, %v1063
    %v1069 = vld [vmem:[%s11] sm:$0x1]
    %v1070 = vld [vmem:[%s12] sm:$0x1]
    %1071 = vadd.xlane.f32.xlu0 %v1065
    %v1072 = vpop.xlane.xlu0 %1071
    %1073 = vadd.xlane.f32.xlu0 %v1066
    %v1074 = vpop.xlane.xlu0 %1073
    %1075 = vadd.xlane.f32.xlu0 %v1067
    %v1076 = vpop.xlane.xlu0 %1075
    %1077 = vadd.xlane.f32.xlu0 %v1068
    %v1078 = vpop.xlane.xlu0 %1077
    %v1079 = vmul.f32 %v1072, %v654
    %v1080 = vmul.f32 %v1074, %v654
    %v1081 = vmul.f32 %v1076, %v654
    %v1082 = vmul.f32 %v1078, %v654
    %v1083 = vsub.f32 %v1065, %v1079
    %v1084 = vsub.f32 %v1066, %v1080
    %v1085 = vsub.f32 %v1067, %v1081
    %v1086 = vsub.f32 %v1068, %v1082
    %v1087 = vmul.f32 %v1083, %v1083
    %v1088 = vmul.f32 %v1084, %v1084
    %v1089 = vmul.f32 %v1085, %v1085
    %v1090 = vmul.f32 %v1086, %v1086
    %1091 = vadd.xlane.f32.xlu0 %v1087
    %v1092 = vpop.xlane.xlu0 %1091
    %1093 = vadd.xlane.f32.xlu0 %v1088
    %v1094 = vpop.xlane.xlu0 %1093
    %1095 = vadd.xlane.f32.xlu0 %v1089
    %v1096 = vpop.xlane.xlu0 %1095
    %1097 = vadd.xlane.f32.xlu0 %v1090
    %v1098 = vpop.xlane.xlu0 %1097
    %v1099 = vmul.f32 %v1092, %v654
    %v1100 = vmul.f32 %v1094, %v654
    %v1101 = vmul.f32 %v1096, %v654
    %v1102 = vmul.f32 %v1098, %v654
    %v1103 = vadd.f32 %v1099, 1e-05
    %v1104 = vadd.f32 %v1100, 1e-05
    %v1105 = vadd.f32 %v1101, 1e-05
    %v1106 = vadd.f32 %v1102, 1e-05
    %v1107 = vrsqrt.pop %v1103
    %v1108 = vmul.f32 %v1107, %v1103
    %v1109 = vmul.f32 %v1108, %v1107
    %v1110 = vmul.f32 0.5, %v1109
    %v1111 = vsub.f32 1.5, %v1110
    %v1112 = vmul.f32 %v1107, %v1111
    %vm1113 = vweird.f32 %v1103
    %vm1114 = vweird.f32 %v1107
    %vm1115 = vmor %vm1113, %vm1114
    %v1116 = vsel %vm1115, %v1107, %v1112
    %v1117 = vrsqrt.pop %v1104
    %v1118 = vmul.f32 %v1117, %v1104
    %v1119 = vmul.f32 %v1118, %v1117
    %v1120 = vmul.f32 0.5, %v1119
    %v1121 = vsub.f32 1.5, %v1120
    %v1122 = vmul.f32 %v1117, %v1121
    %vm1123 = vweird.f32 %v1104
    %vm1124 = vweird.f32 %v1117
    %vm1125 = vmor %vm1123, %vm1124
    %v1126 = vsel %vm1125, %v1117, %v1122
    %v1127 = vrsqrt.pop %v1105
    %v1128 = vmul.f32 %v1127, %v1105
    %v1129 = vmul.f32 %v1128, %v1127
    %v1130 = vmul.f32 0.5, %v1129
    %v1131 = vsub.f32 1.5, %v1130
    %v1132 = vmul.f32 %v1127, %v1131
    %vm1133 = vweird.f32 %v1105
    %vm1134 = vweird.f32 %v1127
    %vm1135 = vmor %vm1133, %vm1134
    %v1136 = vsel %vm1135, %v1127, %v1132
    %v1137 = vrsqrt.pop %v1106
    %v1138 = vmul.f32 %v1137, %v1106
    %v1139 = vmul.f32 %v1138, %v1137
    %v1140 = vmul.f32 0.5, %v1139
    %v1141 = vsub.f32 1.5, %v1140
    %v1142 = vmul.f32 %v1137, %v1141
    %vm1143 = vweird.f32 %v1106
    %vm1144 = vweird.f32 %v1137
    %vm1145 = vmor %vm1143, %vm1144
    %v1146 = vsel %vm1145, %v1137, %v1142
    %v1147 = vmul.f32 %v1083, %v1116
    %v1148 = vmul.f32 %v1084, %v1126
    %v1149 = vmul.f32 %v1085, %v1136
    %v1150 = vmul.f32 %v1086, %v1146
    %v1152 = vperm.slane %v1069, 0
    %v1154 = vmul.f32 %v1147, %v1152
    %v1155 = vmul.f32 %v1148, %v1152
    %v1156 = vmul.f32 %v1149, %v1152
    %v1157 = vmul.f32 %v1150, %v1152
    %v1159 = vperm.slane %v1070, 0
    %v1161 = vadd.f32 %v1154, %v1159
    %v1162 = vadd.f32 %v1155, %v1159
    %v1163 = vadd.f32 %v1156, %v1159
    %v1164 = vadd.f32 %v1157, %v1159
    %1165 = vst [vmem:[#allocation13] sm:$0xff] %v1161
    %1166 = vst [vmem:[#allocation13 + $0x8] sm:$0xff] %v1162
    %1167 = vst [vmem:[#allocation13 + $0x10] sm:$0xff] %v1163
    %1168 = vst [vmem:[#allocation13 + $0x18] sm:$0xff] %v1164
    %1169 = vst.msk [vmem:[#allocation14] sm:$0xff] %vm436, %v477
    %1170 = vst.msk [vmem:[#allocation14 + $0x8] sm:$0xff] %vm436, %v478
    %1171 = vst.msk [vmem:[#allocation14 + $0x10] sm:$0xff] %vm436, %v479
    %1172 = vst.msk [vmem:[#allocation14 + $0x18] sm:$0xff] %vm436, %v480
    // Predicated region
    $region78: #{tpu_custom_call.1} parent=1 // pred_check
      _
    $region79: #{tpu_custom_call.1} parent=1 // pred_check_branch
      %1174 = sbr.rel (0) target = $region81
    $region80: #{tpu_custom_call.1} parent=1 // pred_region
      %1176 = vsyncadd [#allocation4], 0
      %s1177 = sshll.u32 [#allocation13], 4
      %s1178 = int_to_ptr.vmem [resolvable:$true] %s1177
      %s1179 = sshll.u32 %s13, 4
      %s1180 = int_to_ptr.hbm [resolvable:$true] %s1179
      %1185 = dma.vmem_to_hbm [thread:$0]  %s1178, 512, %s1180, [#allocation4], 128, 128, 8
    $region81: #{tpu_custom_call.1} parent=1 // pred_fallthru
      _
    // Predicated region
    $region82: #{tpu_custom_call.1} parent=1 // pred_check
      _
    $region83: #{tpu_custom_call.1} parent=1 // pred_check_branch
      %1187 = sbr.rel (0) target = $region85
    $region84: #{tpu_custom_call.1} parent=1 // pred_region
      %1189 = vsyncadd [#allocation15], 0
      %s1190 = sshll.u32 [#allocation14], 4
      %s1191 = int_to_ptr.vmem [resolvable:$true] %s1190
      %s1192 = sshll.u32 %s14, 4
      %s1193 = int_to_ptr.hbm [resolvable:$true] %s1192
      %1198 = dma.vmem_to_hbm [thread:$0]  %s1191, 512, %s1193, [#allocation15], 128, 128, 8
    $region85: #{tpu_custom_call.1} parent=1 // pred_fallthru
      _
    // Predicated region
    $region86: #{tpu_custom_call.1} parent=1 // pred_check
      _
    $region87: #{tpu_custom_call.1} parent=1 // pred_check_branch
      %1200 = sbr.rel (0) target = $region89
    $region88: #{tpu_custom_call.1} parent=1 // pred_region
      %1202 = dma.done [#allocation4], 512
    $region89: #{tpu_custom_call.1} parent=1 // pred_fallthru
      _
    // Predicated region
    $region90: #{tpu_custom_call.1} parent=1 // pred_check
      _
    $region91: #{tpu_custom_call.1} parent=1 // pred_check_branch
      %1204 = sbr.rel (0) target = $region93
    $region92: #{tpu_custom_call.1} parent=1 // pred_region
      %1206 = dma.done [#allocation15], 512
    $region93: #{tpu_custom_call.1} parent=1 // pred_fallthru
      _
    %1207 = vsyncpa [#allocation3], 1
    %1208 = vsyncpa [#allocation6], 1
    %1209 = vsyncpa [#allocation9], 1
    %1210 = vsyncpa [#allocation12], 1
    %1211 = vsyncpa [#allocation4], 1
    %1212 = vsyncpa [#allocation15], 1

</llo_original>
